<compile_context>
chip_gen: v7x
topology: tpu7x:2x2x1
jax: 0.10.0
libtpu: 0.0.40
codegen_flags: <defaults>
</compile_context>

<pallas_src>
import functools
import math

import jax
import jax.numpy as jnp
from jax.experimental import pallas as pl
from jax.experimental.pallas import tpu as pltpu


def _dice_sums_kernel(s_ref, t_ref, m_ref, out_ref, *,
                      hw, tile_n, tiles_per_split, ragged, exp_bf16):
    """One (batch, spatial-split, spatial-tile) grid step.

    s_ref, t_ref : (1, C, tile_n) logits (channels on sublanes, spatial on lanes)
    m_ref        : (1, mc, tile_n) validity mask, mc in {1, C}
    out_ref      : (1, 1, C, 3) accumulator [intersection, student_sq, teacher_sq];
                   resident in VMEM across the spatial ("arbitrary") axis.
    """
    t_idx = pl.program_id(2)

    # New (batch, split) output block -> reset the tiny accumulator.
    @pl.when(t_idx == 0)
    def _():
        out_ref[...] = jnp.zeros_like(out_ref)

    s = s_ref[0].astype(jnp.float32)   # (C, tile_n)
    t = t_ref[0].astype(jnp.float32)   # (C, tile_n)
    m = m_ref[0].astype(jnp.float32)   # (mc, tile_n)

    if ragged:
        # Only the globally-last spatial tile can read out-of-bounds lanes.
        # OOB block contents are unspecified: zero the logits so the softmax
        # stays finite, and fold lane validity into the mask with one multiply.
        t_global = pl.program_id(1) * tiles_per_split + t_idx
        lane = jax.lax.broadcasted_iota(jnp.int32, (1, tile_n), 1)
        lane_ok = (t_global * tile_n + lane) < hw
        s = jnp.where(lane_ok, s, 0.0)
        t = jnp.where(lane_ok, t, 0.0)
        m = m * lane_ok.astype(jnp.float32)

    # Softmax over the channel (sublane) axis.
    s = s - jnp.max(s, axis=0, keepdims=True)
    t = t - jnp.max(t, axis=0, keepdims=True)
    if exp_bf16:
        # v6e/v7x packed-bf16 EUP path (~2x exp throughput, ~1e-3 rel error).
        s_e = jnp.exp(s.astype(jnp.bfloat16)).astype(jnp.float32)
        t_e = jnp.exp(t.astype(jnp.bfloat16)).astype(jnp.float32)
    else:
        s_e = jnp.exp(s)
        t_e = jnp.exp(t)
    sp = s_e * pl.reciprocal(jnp.sum(s_e, axis=0, keepdims=True), approx=False)
    tp = t_e * pl.reciprocal(jnp.sum(t_e, axis=0, keepdims=True), approx=False)
    sp = sp * m
    tp = tp * m

    # Fold each product down to (C, 1) inside the step instead of streaming
    # full (C, tile_n) accumulators through VMEM (saves ~24 B/elem of RMW
    # traffic; the cross-lane reduce goes to the otherwise-idle XLU slot).
    i_s = jnp.sum(sp * tp, axis=-1, keepdims=True)   # (C, 1) f32
    s_s = jnp.sum(sp * sp, axis=-1, keepdims=True)
    t_s = jnp.sum(tp * tp, axis=-1, keepdims=True)

    # Tiny (C, 3) RMW on the resident output block, once per grid step.
    out_ref[...] += jnp.concatenate([i_s, s_s, t_s], axis=-1)[None, None]


def _derive_tile_n(hw, bytes_per_col, vmem_budget_bytes, cap_lanes=32 * 1024):
    """Pick the spatial tile: fits the VMEM budget, prefers an exact divisor
    of hw (no ragged masking), multiple of 128, capped at cap_lanes."""
    tn_max = max(128, vmem_budget_bytes // bytes_per_col)
    tn_max = min(tn_max, cap_lanes)
    if hw <= tn_max:
        return hw                      # single tile, never ragged
    t = (tn_max // 128) * 128
    cand = t
    while cand >= 128:                 # largest multiple-of-128 divisor of hw
        if hw % cand == 0:
            return cand
        cand -= 128
    return t                           # no divisor -> ragged last tile


def dice_loss(student_output, teacher_output, valid, smooth=1.0, weights=None,
              vmem_budget_bytes=16 * 1024 * 1024, tile_n=None,
              spatial_splits=None, stream_bf16=False, exp_bf16=False):
    """Pallas implementation of DiceLoss.forward (softmax over dim=1)."""
    B = student_output.shape[0]
    C = student_output.shape[1]
    hw = int(math.prod(student_output.shape[2:])) if student_output.ndim > 2 else 1

    s3 = student_output.reshape(B, C, hw)
    t3 = teacher_output.reshape(B, C, hw)

    # Mask: stream it in its broadcast-minimal shape (don't expand to [B,C,HW]
    # when it is channel-broadcast) -> less HBM traffic on a mem-bound kernel.
    mask_dtype = jnp.bfloat16 if stream_bf16 else jnp.float32
    if valid is None:
        m3 = jnp.ones((B, 1, hw), dtype=mask_dtype)
    else:
        v = jnp.asarray(valid)
        if v.ndim == student_output.ndim - 1:      # e.g. [B, H, W] -> [B, 1, H, W]
            v = v[:, None]
        assert v.ndim == student_output.ndim, "valid mask rank mismatch"
        assert v.shape[1] in (1, C), "valid mask channel dim must be 1 or C"
        m3 = v.reshape(B, v.shape[1], hw).astype(mask_dtype)
    mc = m3.shape[1]

    if stream_bf16:
        s3 = s3.astype(jnp.bfloat16)
        t3 = t3.astype(jnp.bfloat16)

    # Per-lane-column VMEM bytes: double-buffered inputs + generous allowance
    # for in-kernel f32 temporaries (softmax intermediates, products).
    s_itemsize = jnp.dtype(s3.dtype).itemsize
    m_itemsize = jnp.dtype(m3.dtype).itemsize
    bytes_per_col = 2 * (2 * C * s_itemsize + mc * m_itemsize) + 8 * C * 4

    if tile_n is None:
        tile_n = _derive_tile_n(hw, bytes_per_col, vmem_budget_bytes)
    assert tile_n == hw or tile_n % 128 == 0, "tile_n must be multiple of 128 or == HW"

    n_tiles = pl.cdiv(hw, tile_n)
    ragged = (n_tiles * tile_n != hw)

    # Megacore: when B == 1, split the spatial range into a second "parallel"
    # axis so both v7x TensorCores get work (neutral on v5e/v6e).
    if spatial_splits is None:
        n_splits = 2 if (B == 1 and n_tiles >= 2 and n_tiles % 2 == 0) else 1
    else:
        n_splits = int(spatial_splits)
        assert n_splits >= 1 and n_tiles % n_splits == 0, \
            "spatial_splits must evenly divide the number of spatial tiles"
    tps = n_tiles // n_splits

    # VMEM limit derived from estimated usage, clamped to device capacity.
    try:
        device_vmem = int(pltpu.get_tpu_info().vmem_capacity_bytes)
    except Exception:
        device_vmem = 64 * 1024 * 1024     # conservative: v7x per-TC VMEM
    vmem_limit = int(min(0.9 * device_vmem,
                         max(32 * 1024 * 1024,
                             2 * bytes_per_col * tile_n + 8 * 1024 * 1024)))

    s_spec = pl.BlockSpec((1, C, tile_n), lambda b, s, t: (b, 0, s * tps + t))
    m_spec = pl.BlockSpec((1, mc, tile_n), lambda b, s, t: (b, 0, s * tps + t))
    out_spec = pl.BlockSpec((1, 1, C, 3), lambda b, s, t: (b, s, 0, 0))

    kernel = functools.partial(_dice_sums_kernel, hw=hw, tile_n=tile_n,
                               tiles_per_split=tps, ragged=ragged,
                               exp_bf16=exp_bf16)

    partials = pl.pallas_call(
        kernel,
        out_shape=jax.ShapeDtypeStruct((B, n_splits, C, 3), jnp.float32),
        grid=(B, n_splits, tps),
        in_specs=[s_spec, s_spec, m_spec],
        out_specs=out_spec,
        compiler_params=pltpu.CompilerParams(
            dimension_semantics=("parallel", "parallel", "arbitrary"),
            vmem_limit_bytes=vmem_limit,
        ),
    )(s3, t3, m3)

    # Cheap final per-class scalar math in plain JAX.
    sums = jnp.sum(partials.astype(jnp.float32), axis=(0, 1))   # (C, 3)
    inter, s_sum, t_sum = sums[:, 0], sums[:, 1], sums[:, 2]
    dice = (2.0 * inter + smooth) / (s_sum + t_sum + smooth)
    if weights is None:
        w = jnp.ones((C,), jnp.float32)
    else:
        w = jnp.asarray(weights, jnp.float32)
    return jnp.sum(w * (1.0 - dice)) / C


def _reference_dice_loss(student, teacher, valid, smooth=1.0, weights=None):
    """Pure-JAX mirror of the PyTorch DiceLoss module, for correctness check."""
    sp = jax.nn.softmax(student, axis=1)
    tp = jax.nn.softmax(teacher, axis=1)
    v = jnp.asarray(valid).astype(sp.dtype)
    if v.ndim == student.ndim - 1:
        v = v[:, None]
    sp = sp * v
    tp = tp * v
    C = student.shape[1]
    loss = 0.0
    for i in range(C):
        w = 1.0 if weights is None else weights[i]
        inter = jnp.sum(sp[:, i] * tp[:, i])
        ssum = jnp.sum(sp[:, i] * sp[:, i])
        tsum = jnp.sum(tp[:, i] * tp[:, i])
        dice = (2.0 * inter + smooth) / (ssum + tsum + smooth)
        loss = loss + w * (1.0 - dice)
    return loss / C


if __name__ == "__main__":
    key = jax.random.PRNGKey(0)
    k1, k2, k3, k4, k5, k6, k7, k8 = jax.random.split(key, 8)

    # Case 1: B=2, C=4, 16x16, channel-broadcast mask [B,1,H,W].
    B, C, H, W = 2, 4, 16, 16
    student = jax.random.normal(k1, (B, C, H, W), dtype=jnp.float32)
    teacher = jax.random.normal(k2, (B, C, H, W), dtype=jnp.float32)
    valid = (jax.random.uniform(k3, (B, 1, H, W)) > 0.2).astype(jnp.float32)

    out1 = jax.block_until_ready(dice_loss(student, teacher, valid))
    ref1 = _reference_dice_loss(student, teacher, valid)
    assert jnp.allclose(out1, ref1, rtol=1e-5, atol=1e-5), (out1, ref1)

    # Case 2: per-class weights + full-shape mask + non-default smooth.
    weights = [0.5, 1.0, 2.0, 1.5]
    valid_full = (jax.random.uniform(k4, (B, C, H, W)) > 0.3).astype(jnp.float32)
    out2 = jax.block_until_ready(
        dice_loss(student, teacher, valid_full, smooth=0.5, weights=weights))
    ref2 = _reference_dice_loss(student, teacher, valid_full, smooth=0.5, weights=weights)
    assert jnp.allclose(out2, ref2, rtol=1e-5, atol=1e-5), (out2, ref2)

    # Case 3: ragged spatial tiling (forced tile_n=128 on HW=160) exercising
    # multi-tile accumulation + in-kernel lane masking; mask given as [B,H,W].
    B3, C3, H3, W3 = 2, 3, 16, 10
    s3_ = jax.random.normal(k5, (B3, C3, H3, W3), dtype=jnp.float32)
    t3_ = jax.random.normal(k6, (B3, C3, H3, W3), dtype=jnp.float32)
    v3_ = jnp.ones((B3, H3, W3), dtype=jnp.float32)
    out3 = jax.block_until_ready(dice_loss(s3_, t3_, v3_, tile_n=128))
    ref3 = _reference_dice_loss(s3_, t3_, v3_)
    assert jnp.allclose(out3, ref3, rtol=1e-5, atol=1e-5), (out3, ref3)

    # Case 4: B=1 with forced small tiles -> automatic spatial split into a
    # second "parallel" axis (v7x megacore path); exercises the split indexing.
    B4, C4, H4, W4 = 1, 4, 16, 32
    s4_ = jax.random.normal(k7, (B4, C4, H4, W4), dtype=jnp.float32)
    t4_ = jax.random.normal(k8, (B4, C4, H4, W4), dtype=jnp.float32)
    v4_ = (jax.random.uniform(k3, (B4, 1, H4, W4)) > 0.5).astype(jnp.float32)
    out4 = jax.block_until_ready(dice_loss(s4_, t4_, v4_, tile_n=128))
    ref4 = _reference_dice_loss(s4_, t4_, v4_)
    assert jnp.allclose(out4, ref4, rtol=1e-5, atol=1e-5), (out4, ref4)

    # Case 5: bf16-streaming path (v5e HBM-roofline lever) -- compiles/runs and
    # stays close to the f32 reference (loose tolerance by construction).
    out5 = jax.block_until_ready(dice_loss(student, teacher, valid, stream_bf16=True))
    assert bool(jnp.isfinite(out5)) and abs(float(out5) - float(ref1)) < 5e-2, (out5, ref1)

    print("KERNEL_OK")
</pallas_src>

<mosaic_0001>
module attributes {stable_mosaic.version = 11 : i64} {
  func.func @_dice_sums_kernel(%arg0: i32, %arg1: i32, %arg2: i32, %arg3: memref<1x4x256xf32, #tpu.memory_space<vmem>>, %arg4: memref<1x4x256xf32, #tpu.memory_space<vmem>>, %arg5: memref<1x1x256xf32, #tpu.memory_space<vmem>>, %arg6: memref<1x1x4x3xf32, #tpu.memory_space<vmem>>) attributes {dimension_semantics = [#tpu.dimension_semantics<parallel>, #tpu.dimension_semantics<parallel>, #tpu.dimension_semantics<arbitrary>], iteration_bounds = array<i64: 2, 1, 1>, scalar_prefetch = 0 : i64, scratch_operands = 0 : i64, tpu.core_type = #tpu.core_type<tc>, window_params = [{transform_indices = @transform_0, window_bounds = array<i64: 1, 4, 256>}, {transform_indices = @transform_1, window_bounds = array<i64: 1, 4, 256>}, {transform_indices = @transform_2, window_bounds = array<i64: 1, 1, 256>}, {transform_indices = @transform_3, window_bounds = array<i64: 1, 1, 4, 3>}]} {
    %c0_i32 = arith.constant 0 : i32
    %0 = arith.cmpi eq, %arg2, %c0_i32 : i32
    %1 = arith.extui %0 : i1 to i32
    %c0_i32_0 = arith.constant 0 : i32
    %2 = arith.cmpi ne, %1, %c0_i32_0 : i32
    scf.if %2 {
      %cst_23 = arith.constant 0.000000e+00 : f32
      %47 = vector.broadcast %cst_23 : f32 to vector<1x1x4x3xf32>
      %c0_24 = arith.constant 0 : index
      %c0_25 = arith.constant 0 : index
      %c0_26 = arith.constant 0 : index
      %c0_27 = arith.constant 0 : index
      %48 = vector.load %arg6[%c0_24, %c0_25, %c0_26, %c0_27] : memref<1x1x4x3xf32, #tpu.memory_space<vmem>>, vector<1x1x4x3xf32>
      tpu.vector_store %arg6[%c0_24, %c0_25, %c0_26, %c0_27], %47 {strides = array<i32>} : memref<1x1x4x3xf32, #tpu.memory_space<vmem>>, vector<1x1x4x3xf32>,
    } else {
    }
    %c0 = arith.constant 0 : index
    %c0_1 = arith.constant 0 : index
    %c0_2 = arith.constant 0 : index
    %3 = vector.load %arg3[%c0, %c0_1, %c0_2] : memref<1x4x256xf32, #tpu.memory_space<vmem>>, vector<1x4x256xf32>
    %4 = vector.shape_cast %3 : vector<1x4x256xf32> to vector<4x256xf32>
    %c0_3 = arith.constant 0 : index
    %c0_4 = arith.constant 0 : index
    %c0_5 = arith.constant 0 : index
    %5 = vector.load %arg4[%c0_3, %c0_4, %c0_5] : memref<1x4x256xf32, #tpu.memory_space<vmem>>, vector<1x4x256xf32>
    %6 = vector.shape_cast %5 : vector<1x4x256xf32> to vector<4x256xf32>
    %c0_6 = arith.constant 0 : index
    %c0_7 = arith.constant 0 : index
    %c0_8 = arith.constant 0 : index
    %7 = vector.load %arg5[%c0_6, %c0_7, %c0_8] : memref<1x1x256xf32, #tpu.memory_space<vmem>>, vector<1x1x256xf32>
    %8 = vector.shape_cast %7 : vector<1x1x256xf32> to vector<1x256xf32>
    %cst = arith.constant dense<0xFF800000> : vector<256xf32>
    %9 = vector.multi_reduction <maximumf>, %4, %cst [0] : vector<4x256xf32> to vector<256xf32>
    %10 = vector.shape_cast %9 : vector<256xf32> to vector<1x256xf32>
    %11 = vector.broadcast %10 : vector<1x256xf32> to vector<4x256xf32>
    %12 = arith.subf %4, %11 : vector<4x256xf32>
    %cst_9 = arith.constant dense<0xFF800000> : vector<256xf32>
    %13 = vector.multi_reduction <maximumf>, %6, %cst_9 [0] : vector<4x256xf32> to vector<256xf32>
    %14 = vector.shape_cast %13 : vector<256xf32> to vector<1x256xf32>
    %15 = vector.broadcast %14 : vector<1x256xf32> to vector<4x256xf32>
    %16 = arith.subf %6, %15 : vector<4x256xf32>
    %17 = math.exp %12 : vector<4x256xf32>
    %18 = math.exp %16 : vector<4x256xf32>
    %cst_10 = arith.constant dense<0.000000e+00> : vector<256xf32>
    %19 = vector.multi_reduction <add>, %17, %cst_10 [0] : vector<4x256xf32> to vector<256xf32>
    %20 = vector.shape_cast %19 : vector<256xf32> to vector<1x256xf32>
    %21 = tpu.reciprocal %20 : vector<1x256xf32> -> vector<1x256xf32>
    %22 = vector.broadcast %21 : vector<1x256xf32> to vector<4x256xf32>
    %23 = arith.mulf %17, %22 : vector<4x256xf32>
    %cst_11 = arith.constant dense<0.000000e+00> : vector<256xf32>
    %24 = vector.multi_reduction <add>, %18, %cst_11 [0] : vector<4x256xf32> to vector<256xf32>
    %25 = vector.shape_cast %24 : vector<256xf32> to vector<1x256xf32>
    %26 = tpu.reciprocal %25 : vector<1x256xf32> -> vector<1x256xf32>
    %27 = vector.broadcast %26 : vector<1x256xf32> to vector<4x256xf32>
    %28 = arith.mulf %18, %27 : vector<4x256xf32>
    %29 = vector.broadcast %8 : vector<1x256xf32> to vector<4x256xf32>
    %30 = arith.mulf %23, %29 : vector<4x256xf32>
    %31 = vector.broadcast %8 : vector<1x256xf32> to vector<4x256xf32>
    %32 = arith.mulf %28, %31 : vector<4x256xf32>
    %33 = arith.mulf %30, %32 : vector<4x256xf32>
    %cst_12 = arith.constant dense<0.000000e+00> : vector<4xf32>
    %34 = vector.multi_reduction <add>, %33, %cst_12 [1] : vector<4x256xf32> to vector<4xf32>
    %35 = vector.shape_cast %34 : vector<4xf32> to vector<4x1xf32>
    %36 = arith.mulf %30, %30 : vector<4x256xf32>
    %cst_13 = arith.constant dense<0.000000e+00> : vector<4xf32>
    %37 = vector.multi_reduction <add>, %36, %cst_13 [1] : vector<4x256xf32> to vector<4xf32>
    %38 = vector.shape_cast %37 : vector<4xf32> to vector<4x1xf32>
    %39 = arith.mulf %32, %32 : vector<4x256xf32>
    %cst_14 = arith.constant dense<0.000000e+00> : vector<4xf32>
    %40 = vector.multi_reduction <add>, %39, %cst_14 [1] : vector<4x256xf32> to vector<4xf32>
    %41 = vector.shape_cast %40 : vector<4xf32> to vector<4x1xf32>
    %c0_15 = arith.constant 0 : index
    %c0_16 = arith.constant 0 : index
    %c0_17 = arith.constant 0 : index
    %c0_18 = arith.constant 0 : index
    %42 = vector.load %arg6[%c0_15, %c0_16, %c0_17, %c0_18] : memref<1x1x4x3xf32, #tpu.memory_space<vmem>>, vector<1x1x4x3xf32>
    %43 = tpu.concatenate %35, %38, %41 in 1 : vector<4x1xf32>, vector<4x1xf32>, vector<4x1xf32> -> vector<4x3xf32>
    %44 = vector.shape_cast %43 : vector<4x3xf32> to vector<1x1x4x3xf32>
    %45 = arith.addf %42, %44 : vector<1x1x4x3xf32>
    %c0_19 = arith.constant 0 : index
    %c0_20 = arith.constant 0 : index
    %c0_21 = arith.constant 0 : index
    %c0_22 = arith.constant 0 : index
    %46 = vector.load %arg6[%c0_19, %c0_20, %c0_21, %c0_22] : memref<1x1x4x3xf32, #tpu.memory_space<vmem>>, vector<1x1x4x3xf32>
    tpu.vector_store %arg6[%c0_19, %c0_20, %c0_21, %c0_22], %45 {strides = array<i32>} : memref<1x1x4x3xf32, #tpu.memory_space<vmem>>, vector<1x1x4x3xf32>,
    return
  }
  func.func @transform_0(%arg0: i32, %arg1: i32, %arg2: i32) -> (i32, i32, i32) {
    %c1_i32 = arith.constant 1 : i32
    %0 = arith.muli %arg1, %c1_i32 : i32
    %1 = arith.addi %0, %arg2 : i32
    %c0_i32 = arith.constant 0 : i32
    %c0_i32_0 = arith.constant 0 : i32
    return %arg0, %c0_i32, %1 : i32, i32, i32
  }
  func.func @transform_1(%arg0: i32, %arg1: i32, %arg2: i32) -> (i32, i32, i32) {
    %c1_i32 = arith.constant 1 : i32
    %0 = arith.muli %arg1, %c1_i32 : i32
    %1 = arith.addi %0, %arg2 : i32
    %c0_i32 = arith.constant 0 : i32
    %c0_i32_0 = arith.constant 0 : i32
    return %arg0, %c0_i32, %1 : i32, i32, i32
  }
  func.func @transform_2(%arg0: i32, %arg1: i32, %arg2: i32) -> (i32, i32, i32) {
    %c1_i32 = arith.constant 1 : i32
    %0 = arith.muli %arg1, %c1_i32 : i32
    %1 = arith.addi %0, %arg2 : i32
    %c0_i32 = arith.constant 0 : i32
    %c0_i32_0 = arith.constant 0 : i32
    return %arg0, %c0_i32, %1 : i32, i32, i32
  }
  func.func @transform_3(%arg0: i32, %arg1: i32, %arg2: i32) -> (i32, i32, i32, i32) {
    %c0_i32 = arith.constant 0 : i32
    %c0_i32_0 = arith.constant 0 : i32
    %c0_i32_1 = arith.constant 0 : i32
    return %arg0, %arg1, %c0_i32, %c0_i32_0 : i32, i32, i32, i32
  }
}

</mosaic_0001>

<llo_original>
// kernel: tpu_custom_call.1
$region0: #{tpu_custom_call.1}
  #allocation0 [shape = 'u32[]', space=smem, size = 0x4, offset = 0x4, fixed_abs, tag = 'smem constant byte address 0x4 - core index']
  #allocation1 [shape = 'u32[144,128]{1,0:T(1,128)}', space=vmem, size = 0x12000, scoped, tag = 'internal scratch']
  %s0 = inlined_call_operand.hbm [shape: f32[2,4,256], index: 0, kind: input, shape index: {}]
  %s1 = inlined_call_operand.hbm [shape: f32[2,4,256], index: 1, kind: input, shape index: {}]
  %s2 = inlined_call_operand.vmem [shape: f32[2,1,256], index: 2, kind: input, shape index: {}]
  %s3 = inlined_call_operand.vmem [shape: f32[2,1,4,3], index: 3, kind: output, shape index: {}]
  %s4 = sld [smem:[#allocation0]]
  $region57: #{tpu_custom_call.1} parent=0
    _
  %s6 = ssub.s32 1, %s4
  %s7 = scalar_select 0, %s6, %s4
  $region1: #{tpu_custom_call.1} parent=0
    #allocation2 [shape = 'u8[8192]{0}', space=vmem, size = 0x2000, scoped, tag = 'input window, operand 0']
    #allocation3 [shape = 's32[2]{0}', space=sflag, size = 0x8, scoped, tag = 'scoped memory for tpu_custom_call.1']
    #allocation4 [shape = 'u8[8192]{0}', space=vmem, size = 0x2000, scoped, tag = 'input window, operand 1']
    #allocation5 [shape = 's32[2]{0}', space=sflag, size = 0x8, scoped, tag = 'scoped memory for tpu_custom_call.1']
    %8 = vsyncpa [#allocation3], 0
    %s9 = scalar_lea.sflag [#allocation3], 1
    %10 = vsyncpa %s9, 0
    %11 = vsyncpa [#allocation5], 0
    %s12 = scalar_lea.sflag [#allocation5], 1
    %13 = vsyncpa %s12, 0
    loop: start=0, step=1, limit=4
    $region2: #{tpu_custom_call.1} parent=1 // loop_pre_header
      _
    $region3: #{tpu_custom_call.1} parent=1 // loop_header
      %s15 = sphi 0, %s19
      %p16 = scmp.ge.s32.totalorder %s15, 4
      %s22 = sphi 0, %s41
      %s23 = sphi 0, %s37
      %s24 = sphi 0, %s33
      %s25 = sphi 0, %s22
      %s26 = sphi 0, %s23
      %s27 = sphi 0, %s24
      %s28 = sphi 0, %s25
      %s29 = sphi 0, %s26
      %s30 = sphi 0, %s27
      %s48 = sphi 0, %s50
      %s51 = sphi 0, %s48
      %s52 = sphi 0, %s51
      %s68 = sphi 0, %s52
      %s78 = sphi 0, %s80
      %s81 = sphi 0, %s78
      %s82 = sphi 0, %s81
      %s98 = sphi 0, %s82
      %s108 = sphi 0, %s110
      %s111 = sphi 0, %s108
      %s112 = sphi 0, %s111
      %s128 = sphi 0, %s112
      %s136 = sphi 0, %s138
      %s139 = sphi 0, %s136
      %s140 = sphi 0, %s139
      %s156 = sphi 0, %s140
    $region4: #{tpu_custom_call.1} parent=1 // loop_header_branch
      %18 = sbr.rel (%p16) target = $region8
    $region5: #{tpu_custom_call.1} parent=1 // loop_body
      %s20 = ssub.s32 %s15, 1
      %s21 = ssub.s32 %s15, 2
      %s31 = sadd.s32 1, %s24
      %p32 = scmp.ge.s32.totalorder %s31, 1
      %s33 = scalar_select %p32, 0, %s31
      %s34 = sadd.s32 1, %s23
      %s35 = scalar_select %p32, %s34, %s23
      %p36 = scmp.ge.s32.totalorder %s35, 1
      %s37 = scalar_select %p36, 0, %s35
      %s38 = sadd.s32 1, %s22
      %s39 = scalar_select %p36, %s38, %s22
      %p40 = scmp.ge.s32.totalorder %s39, 2
      %s41 = scalar_select %p40, 0, %s39
      %s42 = sadd.s32 %s23, %s24
      %s43 = sadd.s32 %s37, %s33
      %s44 = ssub.s32 %s22, %s41
      %s45 = ssub.s32 %s42, %s43
      %s46 = sor.u32 %s44, %s45
      %p47 = scmp.eq.s32.totalorder %s46, 0
      %s49 = sadd.s32 %s48, 1
      %s50 = scalar_select %p47, %s48, %s49
      %p53 = pneg %p47
      %p54 = scmp.eq.s32.totalorder %s15, 1
      %p55 = por %p53, %p54
      %p56 = scmp.ne.s32.totalorder %s48, %s51
      %p57 = scmp.eq.s32.totalorder %s15, 0
      %p58 = por %p56, %p57
      %p59 = scmp.ne.s32.totalorder %s48, %s51
      %p60 = scmp.eq.s32.totalorder %s20, 1
      %p61 = por %p59, %p60
      %p62 = scmp.ne.s32.totalorder %s51, %s52
      %p63 = scmp.eq.s32.totalorder %s20, 0
      %p64 = por %p62, %p63
      %p65 = scmp.ne.s32.totalorder %s51, %s52
      %p66 = scmp.eq.s32.totalorder %s21, 1
      %p67 = por %p65, %p66
      %p69 = scmp.ne.s32.totalorder %s52, %s68
      %p70 = scmp.eq.s32.totalorder %s21, 0
      %p71 = por %p69, %p70
      %s72 = sadd.s32 %s23, %s24
      %s73 = sadd.s32 %s37, %s33
      %s74 = ssub.s32 %s22, %s41
      %s75 = ssub.s32 %s72, %s73
      %s76 = sor.u32 %s74, %s75
      %p77 = scmp.eq.s32.totalorder %s76, 0
      %s79 = sadd.s32 %s78, 1
      %s80 = scalar_select %p77, %s78, %s79
      %p83 = pneg %p77
      %p84 = scmp.eq.s32.totalorder %s15, 1
      %p85 = por %p83, %p84
      %p86 = scmp.ne.s32.totalorder %s78, %s81
      %p87 = scmp.eq.s32.totalorder %s15, 0
      %p88 = por %p86, %p87
      %p89 = scmp.ne.s32.totalorder %s78, %s81
      %p90 = scmp.eq.s32.totalorder %s20, 1
      %p91 = por %p89, %p90
      %p92 = scmp.ne.s32.totalorder %s81, %s82
      %p93 = scmp.eq.s32.totalorder %s20, 0
      %p94 = por %p92, %p93
      %p95 = scmp.ne.s32.totalorder %s81, %s82
      %p96 = scmp.eq.s32.totalorder %s21, 1
      %p97 = por %p95, %p96
      %p99 = scmp.ne.s32.totalorder %s82, %s98
      %p100 = scmp.eq.s32.totalorder %s21, 0
      %p101 = por %p99, %p100
      %s102 = sadd.s32 %s23, %s24
      %s103 = sadd.s32 %s37, %s33
      %s104 = ssub.s32 %s22, %s41
      %s105 = ssub.s32 %s102, %s103
      %s106 = sor.u32 %s104, %s105
      %p107 = scmp.eq.s32.totalorder %s106, 0
      %s109 = sadd.s32 %s108, 1
      %s110 = scalar_select %p107, %s108, %s109
      %p113 = pneg %p107
      %p114 = scmp.eq.s32.totalorder %s15, 1
      %p115 = por %p113, %p114
      %p116 = scmp.ne.s32.totalorder %s108, %s111
      %p117 = scmp.eq.s32.totalorder %s15, 0
      %p118 = por %p116, %p117
      %p119 = scmp.ne.s32.totalorder %s108, %s111
      %p120 = scmp.eq.s32.totalorder %s20, 1
      %p121 = por %p119, %p120
      %p122 = scmp.ne.s32.totalorder %s111, %s112
      %p123 = scmp.eq.s32.totalorder %s20, 0
      %p124 = por %p122, %p123
      %p125 = scmp.ne.s32.totalorder %s111, %s112
      %p126 = scmp.eq.s32.totalorder %s21, 1
      %p127 = por %p125, %p126
      %p129 = scmp.ne.s32.totalorder %s112, %s128
      %p130 = scmp.eq.s32.totalorder %s21, 0
      %p131 = por %p129, %p130
      %s132 = ssub.s32 %s22, %s41
      %s133 = ssub.s32 %s23, %s37
      %s134 = sor.u32 %s132, %s133
      %p135 = scmp.eq.s32.totalorder %s134, 0
      %s137 = sadd.s32 %s136, 1
      %s138 = scalar_select %p135, %s136, %s137
      %p141 = pneg %p135
      %p142 = scmp.eq.s32.totalorder %s15, 1
      %p143 = por %p141, %p142
      %p144 = scmp.ne.s32.totalorder %s136, %s139
      %p145 = scmp.eq.s32.totalorder %s15, 0
      %p146 = por %p144, %p145
      %p147 = scmp.ne.s32.totalorder %s136, %s139
      %p148 = scmp.eq.s32.totalorder %s20, 1
      %p149 = por %p147, %p148
      %p150 = scmp.ne.s32.totalorder %s139, %s140
      %p151 = scmp.eq.s32.totalorder %s20, 0
      %p152 = por %p150, %p151
      %p153 = scmp.ne.s32.totalorder %s139, %s140
      %p154 = scmp.eq.s32.totalorder %s21, 1
      %p155 = por %p153, %p154
      %p157 = scmp.ne.s32.totalorder %s140, %s156
      %p158 = scmp.eq.s32.totalorder %s21, 0
      %p159 = por %p157, %p158
      %p160 = scmp.le.s32.totalorder 1, %s15
      %p161 = scmp.lt.s32.totalorder %s15, 3
      %p162 = pnand %p160, %p161
      %p163 = pneg %p162
      // Predicated region
      $region9: #{tpu_custom_call.1} parent=5 // pred_check
        _
      $region10: #{tpu_custom_call.1} parent=5 // pred_check_branch
        %165 = sbr.rel (%p162) target = $region12
      $region11: #{tpu_custom_call.1} parent=5 // pred_region
        %s166 = ssub.s32 %s15, 1
      $region12: #{tpu_custom_call.1} parent=5 // pred_fallthru
        _
      %p167 = scmp.lt.s32.totalorder %s15, 2
      // Predicated region
      $region13: #{tpu_custom_call.1} parent=5 // pred_check
        %p168 = pneg %p167
      $region14: #{tpu_custom_call.1} parent=5 // pred_check_branch
        %170 = sbr.rel (%p168) target = $region16
      $region15: #{tpu_custom_call.1} parent=5 // pred_region
        // Predicated region
        $region17: #{tpu_custom_call.1} parent=15 // pred_check
          %p171 = pneg %p58
        $region18: #{tpu_custom_call.1} parent=15 // pred_check_branch
          %173 = sbr.rel (%p171) target = $region20
        $region19: #{tpu_custom_call.1} parent=15 // pred_region
          %s174 = sand.u32 %s48, 1
          %s175 = scalar_lea.sflag [#allocation3], %s174
          %s176 = sand.u32 %s48, 1
          %s177 = smul.addr %s176, 8
          %s178 = scalar_lea.vmem [#allocation2], %s177
          %s179 = sadd.s32 %s23, %s24
          %s180 = smul.u32 2, %s179
          %s182 = ssub.s32 128, 128
          %183 = vsyncadd %s175, %s182
          %s184 = smul.addr %s22, 2
          %s185 = sadd.s32 %s180, %s184
          %s186 = smul.addr %s185, 64
          %s187 = scalar_lea.hbm %s0, %s186
          %s189 = sshll.u32 %s178, 4
          %s190 = int_to_ptr.vmem [resolvable:$true] %s189
          %192 = dma.hbm_to_vmem [thread:$0]  %s187, 128, %s190, %s175
        $region20: #{tpu_custom_call.1} parent=15 // pred_fallthru
          _
        // Predicated region
        $region21: #{tpu_custom_call.1} parent=15 // pred_check
          %p193 = pneg %p88
        $region22: #{tpu_custom_call.1} parent=15 // pred_check_branch
          %195 = sbr.rel (%p193) target = $region24
        $region23: #{tpu_custom_call.1} parent=15 // pred_region
          %s196 = sand.u32 %s78, 1
          %s197 = scalar_lea.sflag [#allocation5], %s196
          %s198 = sand.u32 %s78, 1
          %s199 = smul.addr %s198, 8
          %s200 = scalar_lea.vmem [#allocation4], %s199
          %s201 = sadd.s32 %s23, %s24
          %s202 = smul.u32 2, %s201
          %s204 = ssub.s32 128, 128
          %205 = vsyncadd %s197, %s204
          %s206 = smul.addr %s22, 2
          %s207 = sadd.s32 %s202, %s206
          %s208 = smul.addr %s207, 64
          %s209 = scalar_lea.hbm %s1, %s208
          %s211 = sshll.u32 %s200, 4
          %s212 = int_to_ptr.vmem [resolvable:$true] %s211
          %214 = dma.hbm_to_vmem [thread:$0]  %s209, 128, %s212, %s197
        $region24: #{tpu_custom_call.1} parent=15 // pred_fallthru
          _
        // Predicated region
        $region25: #{tpu_custom_call.1} parent=15 // pred_check
          %p215 = pneg %p118
        $region26: #{tpu_custom_call.1} parent=15 // pred_check_branch
          %217 = sbr.rel (%p215) target = $region28
        $region27: #{tpu_custom_call.1} parent=15 // pred_region
          %s218 = sadd.s32 %s23, %s24
          %s219 = smul.u32 2, %s218
          %p220 = scmp.lt.s32.totalorder %s22, 1
          %s221 = scalar_select %p220, %s22, 1
          %p222 = scmp.lt.s32.totalorder %s219, 1
          %s223 = scalar_select %p222, %s219, 1
          %s224 = smul.addr %s221, 2
          %s225 = sadd.s32 %s223, %s224
          %s226 = scalar_lea.vmem %s2, %s225
          %s227 = sadd.s32 %s23, %s24
          %s228 = smul.u32 2, %s227
        $region28: #{tpu_custom_call.1} parent=15 // pred_fallthru
          _
      $region16: #{tpu_custom_call.1} parent=5 // pred_fallthru
        _
      %p229 = scmp.le.s32.totalorder 1, %s15
      %p230 = scmp.lt.s32.totalorder %s15, 3
      %p231 = pnand %p229, %p230
      %p232 = pneg %p231
      // Predicated region
      $region29: #{tpu_custom_call.1} parent=5 // pred_check
        _
      $region30: #{tpu_custom_call.1} parent=5 // pred_check_branch
        %234 = sbr.rel (%p231) target = $region32
      $region31: #{tpu_custom_call.1} parent=5 // pred_region
        %s235 = ssub.s32 %s15, 1
        %s236 = sand.u32 %s51, 1
        %s237 = scalar_lea.sflag [#allocation3], %s236
        %s238 = sand.u32 %s51, 1
        %s239 = smul.addr %s238, 8
        %s240 = scalar_lea.vmem [#allocation2], %s239
        // Predicated region
        $region33: #{tpu_custom_call.1} parent=31 // pred_check
          %p241 = pneg %p64
        $region34: #{tpu_custom_call.1} parent=31 // pred_check_branch
          %243 = sbr.rel (%p241) target = $region36
        $region35: #{tpu_custom_call.1} parent=31 // pred_region
          %244 = dma.done %s237, 128
        $region36: #{tpu_custom_call.1} parent=31 // pred_fallthru
          _
        %s245 = sand.u32 %s81, 1
        %s246 = scalar_lea.sflag [#allocation5], %s245
        %s247 = sand.u32 %s81, 1
        %s248 = smul.addr %s247, 8
        %s249 = scalar_lea.vmem [#allocation4], %s248
        // Predicated region
        $region37: #{tpu_custom_call.1} parent=31 // pred_check
          %p250 = pneg %p94
        $region38: #{tpu_custom_call.1} parent=31 // pred_check_branch
          %252 = sbr.rel (%p250) target = $region40
        $region39: #{tpu_custom_call.1} parent=31 // pred_region
          %253 = dma.done %s246, 128
        $region40: #{tpu_custom_call.1} parent=31 // pred_fallthru
          _
        %s254 = sand.u32 %s51, 1
        %s255 = scalar_lea.sflag [#allocation3], %s254
        %s256 = sand.u32 %s51, 1
        %s257 = smul.addr %s256, 8
        %s258 = scalar_lea.vmem [#allocation2], %s257
        %p259 = pneg %p64
        %p260 = pneg %p61
        %s261 = sand.u32 %s81, 1
        %s262 = scalar_lea.sflag [#allocation5], %s261
        %s263 = sand.u32 %s81, 1
        %s264 = smul.addr %s263, 8
        %s265 = scalar_lea.vmem [#allocation4], %s264
        %p266 = pneg %p94
        %p267 = pneg %p91
        %s268 = sadd.s32 %s26, %s27
        %s269 = smul.u32 2, %s268
        %p270 = scmp.lt.s32.totalorder %s25, 1
        %s271 = scalar_select %p270, %s25, 1
        %p272 = scmp.lt.s32.totalorder %s269, 1
        %s273 = scalar_select %p272, %s269, 1
        %s274 = smul.addr %s271, 2
        %s275 = sadd.s32 %s273, %s274
        %s276 = scalar_lea.vmem %s2, %s275
        %p277 = pneg %p124
        %p278 = pneg %p121
        %p279 = pneg %p152
        %p280 = pneg %p149
        %p281 = scmp.lt.s32.totalorder %s25, 1
        %s282 = scalar_select %p281, %s25, 1
        %p283 = scmp.lt.s32.totalorder %s26, 0
        %s284 = scalar_select %p283, %s26, 0
        %s285 = sadd.s32 %s284, %s282
        %s286 = smul.addr %s285, 4
        %s287 = scalar_lea.vmem %s3, %s286
        %s288 = sadd.s32 %s26, %s27
        %s289 = smul.u32 2, %s288
        %s290 = sadd.s32 %s26, %s27
        %s291 = smul.u32 2, %s290
        %s292 = sadd.s32 %s26, %s27
        %s293 = smul.u32 2, %s292
        %p294 = scmp.lt.s32.totalorder %s25, 1
        %s295 = scalar_select %p294, %s25, 1
        %p296 = scmp.lt.s32.totalorder %s293, 1
        %s297 = scalar_select %p296, %s293, 1
        %s298 = smul.addr %s295, 2
        %s299 = sadd.s32 %s297, %s298
        %s300 = scalar_lea.vmem %s2, %s299
        %s301 = sadd.s32 %s26, %s27
        %s302 = smul.u32 2, %s301
        %p303 = scmp.lt.s32.totalorder %s25, 1
        %s304 = scalar_select %p303, %s25, 1
        %p305 = scmp.lt.s32.totalorder %s26, 0
        %s306 = scalar_select %p305, %s26, 0
        %s307 = sadd.s32 %s306, %s304
        %s308 = smul.addr %s307, 4
        %s309 = scalar_lea.vmem %s3, %s308
        %p310 = scmp.eq.s32.totalorder %s27, 0
        // Predicated region
        $region41: #{tpu_custom_call.1} parent=31 // pred_check
          %p311 = pneg %p310
        $region42: #{tpu_custom_call.1} parent=31 // pred_check_branch
          %313 = sbr.rel (%p311) target = $region44
        $region43: #{tpu_custom_call.1} parent=31 // pred_region
          %vm314 = vcmask 19456
          %315 = vst.msk [vmem:[%s309] sm:$0xf] %vm314, 0.0
        $region44: #{tpu_custom_call.1} parent=31 // pred_fallthru
          _
        %v316 = vld [vmem:[%s240] sm:$0xff]
        %v317 = vld [vmem:[%s249] sm:$0xff]
        %v318 = vld [vmem:[%s300] sm:$0x3]
        %v320 = vcombine.high %v316, %v316
        %vm322 = vcmask 1043456
        %v323 = vsel %vm322, %v316, -inf
        %v324 = vrot.slane %v323, 4
        %v325 = vmax.f32 %v323, %v324
        %v326 = vrot.slane %v325, 2
        %v327 = vmax.f32 %v325, %v326
        %v328 = vrot.slane %v327, 1
        %v329 = vmax.f32 %v327, %v328
        %v330 = vsel %vm322, %v320, -inf
        %v331 = vrot.slane %v330, 4
        %v332 = vmax.f32 %v330, %v331
        %v333 = vrot.slane %v332, 2
        %v334 = vmax.f32 %v332, %v333
        %v335 = vrot.slane %v334, 1
        %v336 = vmax.f32 %v334, %v335
        %v339 = vcombine.low %v329, %v336
        %v341 = vsub.f32 %v316, %v339
        %v343 = vcombine.high %v317, %v317
        %v345 = vsel %vm322, %v317, -inf
        %v346 = vrot.slane %v345, 4
        %v347 = vmax.f32 %v345, %v346
        %v348 = vrot.slane %v347, 2
        %v349 = vmax.f32 %v347, %v348
        %v350 = vrot.slane %v349, 1
        %v351 = vmax.f32 %v349, %v350
        %v352 = vsel %vm322, %v343, -inf
        %v353 = vrot.slane %v352, 4
        %v354 = vmax.f32 %v352, %v353
        %v355 = vrot.slane %v354, 2
        %v356 = vmax.f32 %v354, %v355
        %v357 = vrot.slane %v356, 1
        %v358 = vmax.f32 %v356, %v357
        %v361 = vcombine.low %v351, %v358
        %v363 = vsub.f32 %v317, %v361
        %v364 = vmul.f32 %v341, 1.442695
        %v365 = vpow.pop %v364
        %v366 = vmul.f32 %v363, 1.442695
        %v367 = vpow.pop %v366
        %v369 = vcombine.high %v365, %v365
        %v371 = vsel %vm322, %v365, 0.0
        %v372 = vrot.slane %v371, 4
        %v373 = vadd.f32 %v371, %v372
        %v374 = vrot.slane %v373, 2
        %v375 = vadd.f32 %v373, %v374
        %v376 = vrot.slane %v375, 1
        %v377 = vadd.f32 %v375, %v376
        %v378 = vsel %vm322, %v369, 0.0
        %v379 = vrot.slane %v378, 4
        %v380 = vadd.f32 %v378, %v379
        %v381 = vrot.slane %v380, 2
        %v382 = vadd.f32 %v380, %v381
        %v383 = vrot.slane %v382, 1
        %v384 = vadd.f32 %v382, %v383
        %v385 = vrcp.pop %v377
        %v386 = vrcp.pop %v384
        %v389 = vcombine.low %v385, %v386
        %v391 = vmul.f32 %v365, %v389
        %v393 = vcombine.high %v367, %v367
        %v395 = vsel %vm322, %v367, 0.0
        %v396 = vrot.slane %v395, 4
        %v397 = vadd.f32 %v395, %v396
        %v398 = vrot.slane %v397, 2
        %v399 = vadd.f32 %v397, %v398
        %v400 = vrot.slane %v399, 1
        %v401 = vadd.f32 %v399, %v400
        %v402 = vsel %vm322, %v393, 0.0
        %v403 = vrot.slane %v402, 4
        %v404 = vadd.f32 %v402, %v403
        %v405 = vrot.slane %v404, 2
        %v406 = vadd.f32 %v404, %v405
        %v407 = vrot.slane %v406, 1
        %v408 = vadd.f32 %v406, %v407
        %v409 = vrcp.pop %v401
        %v410 = vrcp.pop %v408
        %v413 = vcombine.low %v409, %v410
        %v415 = vmul.f32 %v367, %v413
        %v417 = vlaneseq
        %v418 = vshrl.u32 %v417, 7
        %v419 = vsub.s32 0, %v418
        %v420 = vrot.slane %v318, %v419
        %v421 = vlaneseq
        %v422 = vshrl.u32 %v421, 7
        %v423 = vsub.s32 1, %v422
        %v424 = vrot.slane %v318, %v423
        %v425 = vcombine.low %v420, %v424
        %v427 = vmul.f32 %v391, %v425
        %v428 = vmul.f32 %v415, %v425
        %v429 = vmul.f32 %v427, %v428
        %v431 = vcombine.high %v429, %v429
        %v433 = vsel %vm322, %v429, 0.0
        %v434 = vsel %vm322, %v431, 0.0
        %v435 = vadd.f32 %v433, %v434
        %436 = vadd.xlane.f32.xlu0 %v435
        %v437 = vpop.xlane.xlu0 %436
        %v438 = vmul.f32 %v427, %v427
        %v440 = vcombine.high %v438, %v438
        %v442 = vsel %vm322, %v438, 0.0
        %v443 = vsel %vm322, %v440, 0.0
        %v444 = vadd.f32 %v442, %v443
        %445 = vadd.xlane.f32.xlu0 %v444
        %v446 = vpop.xlane.xlu0 %445
        %v447 = vmul.f32 %v428, %v428
        %v449 = vcombine.high %v447, %v447
        %v451 = vsel %vm322, %v447, 0.0
        %v452 = vsel %vm322, %v449, 0.0
        %v453 = vadd.f32 %v451, %v452
        %454 = vadd.xlane.f32.xlu0 %v453
        %v455 = vpop.xlane.xlu0 %454
        %v456 = vld [vmem:[%s309] sm:$0xf]
        %vm457 = vcmask 7168
        %v458 = vsel %vm457, %v437, %v446
        %vm459 = vcmask 15360
        %v460 = vsel %vm459, %v458, %v455
        %v461 = vadd.f32 %v456, %v460
        %vm462 = vcmask 19456
        %463 = vst.msk [vmem:[%s309] sm:$0xf] %vm462, %v461
        %p464 = scmp.lt.s32.totalorder %s25, 1
        %s465 = scalar_select %p464, %s25, 1
        %p466 = scmp.lt.s32.totalorder %s26, 0
        %s467 = scalar_select %p466, %s26, 0
        %s468 = sadd.s32 %s467, %s465
        %s469 = smul.addr %s468, 4
        %s470 = scalar_lea.vmem %s3, %s469
        // Predicated region
        $region45: #{tpu_custom_call.1} parent=31 // pred_check
          %p471 = pneg %p149
        $region46: #{tpu_custom_call.1} parent=31 // pred_check_branch
          %473 = sbr.rel (%p471) target = $region48
        $region47: #{tpu_custom_call.1} parent=31 // pred_region
          _
        $region48: #{tpu_custom_call.1} parent=31 // pred_fallthru
          _
      $region32: #{tpu_custom_call.1} parent=5 // pred_fallthru
        _
      %p474 = scmp.le.s32.totalorder 2, %s15
      // Predicated region
      $region49: #{tpu_custom_call.1} parent=5 // pred_check
        %p475 = pneg %p474
      $region50: #{tpu_custom_call.1} parent=5 // pred_check_branch
        %477 = sbr.rel (%p475) target = $region52
      $region51: #{tpu_custom_call.1} parent=5 // pred_region
        %s478 = ssub.s32 %s15, 2
        // Predicated region
        $region53: #{tpu_custom_call.1} parent=51 // pred_check
          %p479 = pneg %p155
        $region54: #{tpu_custom_call.1} parent=51 // pred_check_branch
          %481 = sbr.rel (%p479) target = $region56
        $region55: #{tpu_custom_call.1} parent=51 // pred_region
          %p482 = scmp.lt.s32.totalorder %s28, 1
          %s483 = scalar_select %p482, %s28, 1
          %p484 = scmp.lt.s32.totalorder %s29, 0
          %s485 = scalar_select %p484, %s29, 0
          %s486 = sadd.s32 %s485, %s483
          %s487 = smul.addr %s486, 4
          %s488 = scalar_lea.vmem %s3, %s487
        $region56: #{tpu_custom_call.1} parent=51 // pred_fallthru
          _
      $region52: #{tpu_custom_call.1} parent=5 // pred_fallthru
        _
    $region6: #{tpu_custom_call.1} parent=1 // loop_footer
      %s19 = sadd.s32 1, %s15
    $region7: #{tpu_custom_call.1} parent=1 // loop_footer_branch
      %14 = sbr.rel target = $region3
    $region8: #{tpu_custom_call.1} parent=1 // loop_exit
      _
    %489 = vsyncpa [#allocation3], 1
    %s490 = scalar_lea.sflag [#allocation3], 1
    %491 = vsyncpa %s490, 1
    %492 = vsyncpa [#allocation5], 1
    %s493 = scalar_lea.sflag [#allocation5], 1
    %494 = vsyncpa %s493, 1

</llo_original>
